<compile_context>
chip_gen: v6e
topology: v6e:2x2x1
jax: 0.10.0
libtpu: 0.0.40
codegen_flags: <defaults>
</compile_context>

<pallas_src>
import functools

import jax
import jax.numpy as jnp
from jax.experimental import pallas as pl
from jax.experimental.pallas import tpu as pltpu


def _lsce_kernel(x_ref, t_ref, o_ref, acc_ref, *, smoothing, n_rows, tm):
    i = pl.program_id(0)
    n_i = pl.num_programs(0)

    @pl.when(i == 0)
    def _():
        acc_ref[...] = jnp.zeros_like(acc_ref)

    x_nat = x_ref[...]                       # (TM, C) native dtype (bf16 ok)
    t = t_ref[...]                           # (TM, 1) int32
    c = x_nat.shape[-1]
    confidence = 1.0 - smoothing

    # Row max in native dtype (exact; halves vreg traffic for bf16 inputs),
    # then one upcast to f32 for the exp/sum math.
    m = jnp.max(x_nat, axis=-1, keepdims=True).astype(jnp.float32)     # reduce 1
    shifted = x_nat.astype(jnp.float32) - m                            # (TM, C)
    lse = jnp.log(jnp.sum(jnp.exp(shifted), axis=-1, keepdims=True))   # reduce 2

    # Fused tail: sum(shifted * (s/C + confidence * onehot(target)))
    #   == confidence*shifted[target] + (s/C)*sum(shifted)
    class_ids = jax.lax.broadcasted_iota(jnp.int32, shifted.shape, dimension=1)
    w = (smoothing / c) + confidence * (class_ids == t).astype(jnp.float32)
    combined = jnp.sum(shifted * w, axis=-1, keepdims=True)            # reduce 3

    # loss_row = lse - confidence*shifted[target] - (s/C)*sum(shifted)
    loss_row = lse - combined                                          # (TM, 1)

    # Zero-weight padded rows of the (possibly ragged) last tile.
    row_ids = jax.lax.broadcasted_iota(jnp.int32, (tm, 1), 0) + i * tm
    loss_row = jnp.where(row_ids < n_rows, loss_row, 0.0)

    # VMEM vector accumulator (no per-step cross-lane reduce / SMEM round-trip).
    acc_ref[...] += loss_row

    @pl.when(i == n_i - 1)
    def _():
        o_ref[...] = jnp.sum(acc_ref[...], axis=0, keepdims=True)      # (1, 1)


def _round_up(v, m):
    return ((v + m - 1) // m) * m


def label_smoothing_cross_entropy(x, target, smoothing: float = 0.1,
                                  block_rows: int | None = None):
    """x: (N, C) float logits (f32 or bf16); target: (N,) int class indices.
    Returns the scalar mean label-smoothed cross-entropy (timm semantics)."""
    n, c = x.shape
    t2d = target.astype(jnp.int32).reshape(n, 1)
    itemsize = jnp.dtype(x.dtype).itemsize

    # Row-tile size: target ~4 MiB per logits buffer (8 MiB double-buffered,
    # under every chip's default scoped-VMEM limit), multiple of 16, capped by N.
    if block_rows is None:
        budget = 4 << 20
        tm = max(16, (budget // (c * itemsize)) // 16 * 16)
    else:
        tm = max(16, (min(block_rows, _round_up(n, 16)) // 16) * 16)
    tm = int(min(tm, _round_up(n, 16), 4096))
    n_tiles = pl.cdiv(n, tm)

    kernel = functools.partial(_lsce_kernel, smoothing=float(smoothing),
                               n_rows=n, tm=tm)

    # VMEM estimate: double-buffered logits + targets tiles, plus accumulator.
    est = 2 * (tm * c * itemsize + tm * 128 * 4) + tm * 128 * 4 + (1 << 16)
    cp_kwargs = {"dimension_semantics": ("arbitrary",)}
    if est > (12 << 20):        # below v5e's 16 MiB default scoped limit
        phys = 64 << 20         # conservative fallback (v7x physical VMEM)
        try:
            phys = int(pltpu.get_tpu_info().vmem_capacity_bytes)
        except Exception:
            pass
        cap = max(min(phys - (8 << 20), 112 << 20), 16 << 20)
        cp_kwargs["vmem_limit_bytes"] = int(min(max(int(est * 1.5), 16 << 20),
                                                cap))

    cost = pl.CostEstimate(
        flops=int(6 * n * c),
        transcendentals=int(n * c),
        bytes_accessed=int(n * c * itemsize + n * 4 + 4),
    )

    partial_sum = pl.pallas_call(
        kernel,
        out_shape=jax.ShapeDtypeStruct((1, 1), jnp.float32),
        grid_spec=pltpu.PrefetchScalarGridSpec(
            num_scalar_prefetch=0,
            grid=(n_tiles,),
            in_specs=[
                pl.BlockSpec((tm, c), lambda i: (i, 0)),   # logits (native dtype)
                pl.BlockSpec((tm, 1), lambda i: (i, 0)),   # targets (int32)
            ],
            out_specs=pl.BlockSpec((1, 1), lambda i: (0, 0)),
            scratch_shapes=[pltpu.VMEM((tm, 1), jnp.float32)],
        ),
        compiler_params=pltpu.CompilerParams(**cp_kwargs),
        cost_estimate=cost,
    )(x, t2d)

    return partial_sum[0, 0] / n


if __name__ == "__main__":
    key = jax.random.PRNGKey(0)
    kx, kt = jax.random.split(key)

    # N not a multiple of the row tile -> exercises the ragged-tile row mask.
    N, C = 60, 128
    x = jax.random.normal(kx, (N, C), dtype=jnp.float32)
    target = jax.random.randint(kt, (N,), 0, C, dtype=jnp.int32)

    def ref_loss(xf, tgt, smoothing=0.1):
        lp = jax.nn.log_softmax(xf.astype(jnp.float32), axis=-1)
        nll = -jnp.take_along_axis(lp, tgt[:, None], axis=-1)[:, 0]
        sm = -jnp.mean(lp, axis=-1)
        return jnp.mean((1.0 - smoothing) * nll + smoothing * sm)

    ref = ref_loss(x, target, 0.1)

    # Forced small tiles: 4 grid steps, ragged last tile.
    loss = label_smoothing_cross_entropy(x, target, smoothing=0.1,
                                         block_rows=16)
    jax.block_until_ready(loss)
    assert jnp.allclose(loss, ref, atol=1e-5, rtol=1e-5), (loss, ref)

    # Adaptive tile size (single tile covering all rows at this shape).
    loss_auto = label_smoothing_cross_entropy(x, target, smoothing=0.1)
    jax.block_until_ready(loss_auto)
    assert jnp.allclose(loss_auto, ref, atol=1e-5, rtol=1e-5), (loss_auto, ref)

    # bf16 logits: DMA'd natively; row max in bf16, rest of the math in f32.
    xb = x.astype(jnp.bfloat16)
    loss_b = label_smoothing_cross_entropy(xb, target, smoothing=0.1,
                                           block_rows=16)
    jax.block_until_ready(loss_b)
    ref_b = ref_loss(xb, target, 0.1)
    assert jnp.allclose(loss_b, ref_b, atol=1e-4, rtol=1e-4), (loss_b, ref_b)

    # TODO(synk): no ignore_index handling (original module has none either).
    print("KERNEL_OK")
</pallas_src>

<mosaic_0001>
module attributes {stable_mosaic.version = 11 : i64} {
  func.func @_lsce_kernel(%arg0: i32, %arg1: memref<16x128xf32, #tpu.memory_space<vmem>>, %arg2: memref<16x1xi32, #tpu.memory_space<vmem>>, %arg3: memref<1x1xf32, #tpu.memory_space<vmem>>, %arg4: memref<16x1xf32, #tpu.memory_space<vmem>>) attributes {dimension_semantics = [#tpu.dimension_semantics<arbitrary>], iteration_bounds = array<i64: 4>, scalar_prefetch = 0 : i64, scratch_operands = 1 : i64, tpu.core_type = #tpu.core_type<tc>, window_params = [{transform_indices = @transform_0, window_bounds = array<i64: 16, 128>}, {transform_indices = @transform_1, window_bounds = array<i64: 16, 1>}, {pipeline_mode = #tpu.pipeline_mode<synchronous>, transform_indices = @transform_2, window_bounds = array<i64: 1, 1>}]} {
    %c0_i32 = arith.constant 0 : i32
    %0 = arith.cmpi eq, %arg0, %c0_i32 : i32
    %1 = arith.extui %0 : i1 to i32
    %c0_i32_0 = arith.constant 0 : i32
    %2 = arith.cmpi ne, %1, %c0_i32_0 : i32
    scf.if %2 {
      %cst_14 = arith.constant 0.000000e+00 : f32
      %40 = vector.broadcast %cst_14 : f32 to vector<16x1xf32>
      %c0_15 = arith.constant 0 : index
      %c0_16 = arith.constant 0 : index
      %41 = vector.load %arg4[%c0_15, %c0_16] : memref<16x1xf32, #tpu.memory_space<vmem>>, vector<16x1xf32>
      tpu.vector_store %arg4[%c0_15, %c0_16], %40 {strides = array<i32>} : memref<16x1xf32, #tpu.memory_space<vmem>>, vector<16x1xf32>,
    } else {
    }
    %c0 = arith.constant 0 : index
    %c0_1 = arith.constant 0 : index
    %3 = vector.load %arg1[%c0, %c0_1] : memref<16x128xf32, #tpu.memory_space<vmem>>, vector<16x128xf32>
    %c0_2 = arith.constant 0 : index
    %c0_3 = arith.constant 0 : index
    %4 = vector.load %arg2[%c0_2, %c0_3] : memref<16x1xi32, #tpu.memory_space<vmem>>, vector<16x1xi32>
    %cst = arith.constant dense<0xFF800000> : vector<16xf32>
    %5 = vector.multi_reduction <maximumf>, %3, %cst [1] : vector<16x128xf32> to vector<16xf32>
    %6 = vector.shape_cast %5 : vector<16xf32> to vector<16x1xf32>
    %7 = vector.broadcast %6 : vector<16x1xf32> to vector<16x128xf32>
    %8 = arith.subf %3, %7 : vector<16x128xf32>
    %9 = math.exp %8 : vector<16x128xf32>
    %cst_4 = arith.constant dense<0.000000e+00> : vector<16xf32>
    %10 = vector.multi_reduction <add>, %9, %cst_4 [1] : vector<16x128xf32> to vector<16xf32>
    %11 = vector.shape_cast %10 : vector<16xf32> to vector<16x1xf32>
    %12 = math.log %11 : vector<16x1xf32>
    %13 = tpu.iota {dimensions = array<i32: 1>} : vector<16x128xi32>
    %14 = vector.broadcast %4 : vector<16x1xi32> to vector<16x128xi32>
    %15 = arith.cmpi eq, %13, %14 : vector<16x128xi32>
    %16 = arith.extui %15 : vector<16x128xi1> to vector<16x128xi32>
    %17 = arith.sitofp %16 : vector<16x128xi32> to vector<16x128xf32>
    %cst_5 = arith.constant 0.899999976 : f32
    %18 = vector.broadcast %cst_5 : f32 to vector<16x128xf32>
    %19 = arith.mulf %18, %17 : vector<16x128xf32>
    %cst_6 = arith.constant 7.812500e-04 : f32
    %20 = vector.broadcast %cst_6 : f32 to vector<16x128xf32>
    %21 = arith.addf %20, %19 : vector<16x128xf32>
    %22 = arith.mulf %8, %21 : vector<16x128xf32>
    %cst_7 = arith.constant dense<0.000000e+00> : vector<16xf32>
    %23 = vector.multi_reduction <add>, %22, %cst_7 [1] : vector<16x128xf32> to vector<16xf32>
    %24 = vector.shape_cast %23 : vector<16xf32> to vector<16x1xf32>
    %25 = arith.subf %12, %24 : vector<16x1xf32>
    %26 = tpu.iota {dimensions = array<i32: 0>} : vector<16x1xi32>
    %c16_i32 = arith.constant 16 : i32
    %27 = arith.muli %arg0, %c16_i32 : i32
    %28 = vector.broadcast %27 : i32 to vector<16x1xi32>
    %29 = arith.addi %26, %28 : vector<16x1xi32>
    %c60_i32 = arith.constant 60 : i32
    %30 = vector.broadcast %c60_i32 : i32 to vector<16x1xi32>
    %31 = arith.cmpi slt, %29, %30 : vector<16x1xi32>
    %cst_8 = arith.constant 0.000000e+00 : f32
    %32 = vector.broadcast %cst_8 : f32 to vector<16x1xf32>
    %33 = arith.select %31, %25, %32 : vector<16x1xi1>, vector<16x1xf32>
    %c0_9 = arith.constant 0 : index
    %c0_10 = arith.constant 0 : index
    %34 = vector.load %arg4[%c0_9, %c0_10] : memref<16x1xf32, #tpu.memory_space<vmem>>, vector<16x1xf32>
    %35 = arith.addf %34, %33 : vector<16x1xf32>
    %c0_11 = arith.constant 0 : index
    %c0_12 = arith.constant 0 : index
    %36 = vector.load %arg4[%c0_11, %c0_12] : memref<16x1xf32, #tpu.memory_space<vmem>>, vector<16x1xf32>
    tpu.vector_store %arg4[%c0_11, %c0_12], %35 {strides = array<i32>} : memref<16x1xf32, #tpu.memory_space<vmem>>, vector<16x1xf32>,
    %c3_i32 = arith.constant 3 : i32
    %37 = arith.cmpi eq, %arg0, %c3_i32 : i32
    %38 = arith.extui %37 : i1 to i32
    %c0_i32_13 = arith.constant 0 : i32
    %39 = arith.cmpi ne, %38, %c0_i32_13 : i32
    scf.if %39 {
      %c0_14 = arith.constant 0 : index
      %c0_15 = arith.constant 0 : index
      %40 = vector.load %arg4[%c0_14, %c0_15] : memref<16x1xf32, #tpu.memory_space<vmem>>, vector<16x1xf32>
      %cst_16 = arith.constant dense<0.000000e+00> : vector<1xf32>
      %41 = vector.multi_reduction <add>, %40, %cst_16 [0] : vector<16x1xf32> to vector<1xf32>
      %42 = vector.shape_cast %41 : vector<1xf32> to vector<1x1xf32>
      %c0_17 = arith.constant 0 : index
      %c0_18 = arith.constant 0 : index
      %43 = vector.load %arg3[%c0_17, %c0_18] : memref<1x1xf32, #tpu.memory_space<vmem>>, vector<1x1xf32>
      tpu.vector_store %arg3[%c0_17, %c0_18], %42 {strides = array<i32>} : memref<1x1xf32, #tpu.memory_space<vmem>>, vector<1x1xf32>,
    } else {
    }
    return
  }
  func.func @transform_0(%arg0: i32) -> (i32, i32) {
    %c0_i32 = arith.constant 0 : i32
    %c0_i32_0 = arith.constant 0 : i32
    return %arg0, %c0_i32 : i32, i32
  }
  func.func @transform_1(%arg0: i32) -> (i32, i32) {
    %c0_i32 = arith.constant 0 : i32
    %c0_i32_0 = arith.constant 0 : i32
    return %arg0, %c0_i32 : i32, i32
  }
  func.func @transform_2(%arg0: i32) -> (i32, i32) {
    %c0_i32 = arith.constant 0 : i32
    %c0_i32_0 = arith.constant 0 : i32
    %c0_i32_1 = arith.constant 0 : i32
    return %c0_i32, %c0_i32_0 : i32, i32
  }
}

</mosaic_0001>

<llo_original>
// kernel: tpu_custom_call.1
$region0: #{tpu_custom_call.1}
  #allocation0 [shape = 'u32[]', space=smem, size = 0x4, offset = 0x4, fixed_abs, tag = 'smem constant byte address 0x4 - core index']
  #allocation1 [shape = 'u32[144,128]{1,0:T(1,128)}', space=vmem, size = 0x12000, scoped, tag = 'internal scratch']
  #allocation2 [shape = 'f32[16,1]{1,0:T(8,128)}', space=vmem, size = 0x2000, scoped, tag = 'scratch operand']
  %s0 = inlined_call_operand.vmem [shape: f32[60,128], index: 0, kind: input, shape index: {}]
  %s1 = inlined_call_operand.vmem [shape: s32[60,1], index: 1, kind: input, shape index: {}]
  %s2 = inlined_call_operand.hbm [shape: f32[1,1], index: 2, kind: output, shape index: {}]
  %s3 = sld [smem:[#allocation0]]
  $region49: #{tpu_custom_call.1} parent=0
    _
  %s5 = ssub.s32 1, %s3
  %s6 = scalar_select 0, %s5, %s3
  $region1: #{tpu_custom_call.1} parent=0
    #allocation3 [shape = 'u8[512]{0}', space=vmem, size = 0x400, scoped, tag = 'output window, operand 0, single buffered']
    #allocation4 [shape = 's32[2]{0}', space=sflag, size = 0x8, scoped, tag = 'scoped memory for tpu_custom_call.1']
    %7 = vsyncpa [#allocation4], 0
    loop: start=0, step=1, limit=6
    $region2: #{tpu_custom_call.1} parent=1 // loop_pre_header
      _
    $region3: #{tpu_custom_call.1} parent=1 // loop_header
      %s9 = sphi 0, %s13
      %p10 = scmp.ge.s32.totalorder %s9, 6
      %s19 = sphi 0, %s21
      %s22 = sphi 0, %s19
      %s23 = sphi 0, %s22
      %s39 = sphi 0, %s23
      %s45 = sphi 0, %s47
      %s48 = sphi 0, %s45
      %s49 = sphi 0, %s48
      %s65 = sphi 0, %s49
      %s69 = sphi 0, %s69
      %s71 = sphi 0, %s69
      %s72 = sphi 0, %s71
      %s86 = sphi 0, %s72
    $region4: #{tpu_custom_call.1} parent=1 // loop_header_branch
      %12 = sbr.rel (%p10) target = $region8
    $region5: #{tpu_custom_call.1} parent=1 // loop_body
      %s14 = ssub.s32 %s9, 1
      %s15 = ssub.s32 %s9, 2
      %s16 = sadd.s32 %s9, 1
      %s17 = ssub.s32 %s9, %s16
      %p18 = scmp.eq.s32.totalorder %s17, 0
      %s20 = sadd.s32 %s19, 1
      %s21 = scalar_select %p18, %s19, %s20
      %p24 = pneg %p18
      %p25 = scmp.eq.s32.totalorder %s9, 3
      %p26 = por %p24, %p25
      %p27 = scmp.ne.s32.totalorder %s19, %s22
      %p28 = scmp.eq.s32.totalorder %s9, 0
      %p29 = por %p27, %p28
      %p30 = scmp.ne.s32.totalorder %s19, %s22
      %p31 = scmp.eq.s32.totalorder %s14, 3
      %p32 = por %p30, %p31
      %p33 = scmp.ne.s32.totalorder %s22, %s23
      %p34 = scmp.eq.s32.totalorder %s14, 0
      %p35 = por %p33, %p34
      %p36 = scmp.ne.s32.totalorder %s22, %s23
      %p37 = scmp.eq.s32.totalorder %s15, 3
      %p38 = por %p36, %p37
      %p40 = scmp.ne.s32.totalorder %s23, %s39
      %p41 = scmp.eq.s32.totalorder %s15, 0
      %p42 = por %p40, %p41
      %s43 = ssub.s32 %s9, %s16
      %p44 = scmp.eq.s32.totalorder %s43, 0
      %s46 = sadd.s32 %s45, 1
      %s47 = scalar_select %p44, %s45, %s46
      %p50 = pneg %p44
      %p51 = scmp.eq.s32.totalorder %s9, 3
      %p52 = por %p50, %p51
      %p53 = scmp.ne.s32.totalorder %s45, %s48
      %p54 = scmp.eq.s32.totalorder %s9, 0
      %p55 = por %p53, %p54
      %p56 = scmp.ne.s32.totalorder %s45, %s48
      %p57 = scmp.eq.s32.totalorder %s14, 3
      %p58 = por %p56, %p57
      %p59 = scmp.ne.s32.totalorder %s48, %s49
      %p60 = scmp.eq.s32.totalorder %s14, 0
      %p61 = por %p59, %p60
      %p62 = scmp.ne.s32.totalorder %s48, %s49
      %p63 = scmp.eq.s32.totalorder %s15, 3
      %p64 = por %p62, %p63
      %p66 = scmp.ne.s32.totalorder %s49, %s65
      %p67 = scmp.eq.s32.totalorder %s15, 0
      %p68 = por %p66, %p67
      %s70 = sadd.s32 %s69, 1
      %p73 = scmp.eq.s32.totalorder %s9, 3
      %p74 = scmp.ne.s32.totalorder %s69, %s71
      %p75 = scmp.eq.s32.totalorder %s9, 0
      %p76 = por %p74, %p75
      %p77 = scmp.ne.s32.totalorder %s69, %s71
      %p78 = scmp.eq.s32.totalorder %s14, 3
      %p79 = por %p77, %p78
      %p80 = scmp.ne.s32.totalorder %s71, %s72
      %p81 = scmp.eq.s32.totalorder %s14, 0
      %p82 = por %p80, %p81
      %p83 = scmp.ne.s32.totalorder %s71, %s72
      %p84 = scmp.eq.s32.totalorder %s15, 3
      %p85 = por %p83, %p84
      %p87 = scmp.ne.s32.totalorder %s72, %s86
      %p88 = scmp.eq.s32.totalorder %s15, 0
      %p89 = por %p87, %p88
      %p90 = scmp.le.s32.totalorder 1, %s9
      %p91 = scmp.lt.s32.totalorder %s9, 5
      %p92 = pnand %p90, %p91
      %p93 = pneg %p92
      // Predicated region
      $region9: #{tpu_custom_call.1} parent=5 // pred_check
        _
      $region10: #{tpu_custom_call.1} parent=5 // pred_check_branch
        %95 = sbr.rel (%p92) target = $region12
      $region11: #{tpu_custom_call.1} parent=5 // pred_region
        %s96 = ssub.s32 %s9, 1
      $region12: #{tpu_custom_call.1} parent=5 // pred_fallthru
        _
      %p97 = scmp.lt.s32.totalorder %s9, 4
      // Predicated region
      $region13: #{tpu_custom_call.1} parent=5 // pred_check
        %p98 = pneg %p97
      $region14: #{tpu_custom_call.1} parent=5 // pred_check_branch
        %100 = sbr.rel (%p98) target = $region16
      $region15: #{tpu_custom_call.1} parent=5 // pred_region
        // Predicated region
        $region17: #{tpu_custom_call.1} parent=15 // pred_check
          %p101 = pneg %p29
        $region18: #{tpu_custom_call.1} parent=15 // pred_check_branch
          %103 = sbr.rel (%p101) target = $region20
        $region19: #{tpu_custom_call.1} parent=15 // pred_region
          %s104 = smul.u32 2, %s9
          %p105 = scmp.lt.s32.totalorder %s104, 7
          %s106 = scalar_select %p105, %s104, 7
          %s107 = smul.addr %s106, 8
          %s108 = scalar_lea.vmem %s0, %s107
          %s109 = smul.u32 2, %s9
        $region20: #{tpu_custom_call.1} parent=15 // pred_fallthru
          _
        // Predicated region
        $region21: #{tpu_custom_call.1} parent=15 // pred_check
          %p110 = pneg %p55
        $region22: #{tpu_custom_call.1} parent=15 // pred_check_branch
          %112 = sbr.rel (%p110) target = $region24
        $region23: #{tpu_custom_call.1} parent=15 // pred_region
          %s113 = smul.u32 2, %s9
          %p114 = scmp.lt.s32.totalorder %s113, 7
          %s115 = scalar_select %p114, %s113, 7
          %s116 = smul.addr %s115, 8
          %s117 = scalar_lea.vmem %s1, %s116
          %s118 = smul.u32 2, %s9
        $region24: #{tpu_custom_call.1} parent=15 // pred_fallthru
          _
      $region16: #{tpu_custom_call.1} parent=5 // pred_fallthru
        _
      %p119 = scmp.le.s32.totalorder 1, %s9
      %p120 = scmp.lt.s32.totalorder %s9, 5
      %p121 = pnand %p119, %p120
      %p122 = pneg %p121
      // Predicated region
      $region25: #{tpu_custom_call.1} parent=5 // pred_check
        _
      $region26: #{tpu_custom_call.1} parent=5 // pred_check_branch
        %124 = sbr.rel (%p121) target = $region28
      $region27: #{tpu_custom_call.1} parent=5 // pred_region
        %s125 = ssub.s32 %s9, 1
        %s126 = smul.u32 2, %s14
        %p127 = scmp.lt.s32.totalorder %s126, 7
        %s128 = scalar_select %p127, %s126, 7
        %s129 = smul.addr %s128, 8
        %s130 = scalar_lea.vmem %s0, %s129
        %p131 = pneg %p35
        %p132 = pneg %p32
        %s133 = smul.u32 2, %s14
        %p134 = scmp.lt.s32.totalorder %s133, 7
        %s135 = scalar_select %p134, %s133, 7
        %s136 = smul.addr %s135, 8
        %s137 = scalar_lea.vmem %s1, %s136
        %p138 = pneg %p61
        %p139 = pneg %p58
        %p140 = pneg %p82
        %p141 = pneg %p79
        %s142 = smul.u32 2, %s14
        %p143 = scmp.lt.s32.totalorder %s142, 7
        %s144 = scalar_select %p143, %s142, 7
        %s145 = smul.addr %s144, 8
        %s146 = scalar_lea.vmem %s0, %s145
        %s147 = smul.u32 2, %s14
        %s148 = smul.u32 2, %s14
        %p149 = scmp.lt.s32.totalorder %s148, 7
        %s150 = scalar_select %p149, %s148, 7
        %s151 = smul.addr %s150, 8
        %s152 = scalar_lea.vmem %s1, %s151
        %s153 = smul.u32 2, %s14
        %p154 = scmp.eq.s32.totalorder %s14, 0
        // Predicated region
        $region29: #{tpu_custom_call.1} parent=27 // pred_check
          %p155 = pneg %p154
        $region30: #{tpu_custom_call.1} parent=27 // pred_check_branch
          %157 = sbr.rel (%p155) target = $region32
        $region31: #{tpu_custom_call.1} parent=27 // pred_region
          %vm158 = vcmask 7168
          %159 = vst.msk [vmem:[#allocation2] sm:$0xff] %vm158, 0.0
          %160 = vst.msk [vmem:[#allocation2 + $0x8] sm:$0xff] %vm158, 0.0
        $region32: #{tpu_custom_call.1} parent=27 // pred_fallthru
          _
        %v161 = vld [vmem:[%s146] sm:$0xff]
        %v162 = vld [vmem:[%s146 + $0x8] sm:$0xff]
        %v163 = vld [vmem:[%s152] sm:$0xff]
        %v164 = vld [vmem:[%s152 + $0x8] sm:$0xff]
        %165 = vmax.xlane.f32.xlu0 %v161
        %v166 = vpop.xlane.xlu0 %165
        %167 = vmax.xlane.f32.xlu0 %v162
        %v168 = vpop.xlane.xlu0 %167
        %v169 = vsub.f32 %v161, %v166
        %v170 = vsub.f32 %v162, %v168
        %v171 = vmul.f32 %v169, 1.442695
        %v172 = vpow.pop %v171
        %v173 = vmul.f32 %v170, 1.442695
        %v174 = vpow.pop %v173
        %175 = vadd.xlane.f32.xlu0 %v172
        %v176 = vpop.xlane.xlu0 %175
        %177 = vadd.xlane.f32.xlu0 %v174
        %v178 = vpop.xlane.xlu0 %177
        %v179 = vlog2.pop %v176
        %v180 = vmul.f32 %v179, 0.6931472
        %v181 = vlog2.pop %v178
        %v182 = vmul.f32 %v181, 0.6931472
        %v183 = vlaneseq
        %v184 = vand.u32 %v183, 127
        %185 = vset.pattern.permute.xlu0 0
        %186 = vperm.xlu0 %185, %v163
        %v187 = vpop.permute.xlu0 %186
        %188 = vset.pattern.permute.xlu0 0
        %189 = vperm.xlu0 %188, %v164
        %v190 = vpop.permute.xlu0 %189
        %vm191 = vcmp.eq.s32.totalorder %v184, %v187
        %vm192 = vcmp.eq.s32.totalorder %v184, %v190
        %v193 = vsel %vm191, 1, 0
        %v194 = vsel %vm192, 1, 0
        %v195 = vcvt.s32.f32 %v193
        %v196 = vcvt.s32.f32 %v194
        %v197 = vmul.f32 %v195, 0.9
        %v198 = vmul.f32 %v196, 0.9
        %v199 = vadd.f32 %v197, 0.00078125
        %v200 = vadd.f32 %v198, 0.00078125
        %v201 = vmul.f32 %v169, %v199
        %v202 = vmul.f32 %v170, %v200
        %203 = vadd.xlane.f32.xlu0 %v201
        %v204 = vpop.xlane.xlu0 %203
        %205 = vadd.xlane.f32.xlu0 %v202
        %v206 = vpop.xlane.xlu0 %205
        %v207 = vsub.f32 %v180, %v204
        %v208 = vsub.f32 %v182, %v206
        %v209 = vlaneseq
        %v210 = vshrl.u32 %v209, 7
        %v211 = vadd.s32 %v210, 8
        %s212 = smul.u32 %s14, 16
        %v213 = vstv %s212
        %v214 = vadd.s32 %v210, %v213
        %v215 = vadd.s32 %v211, %v213
        %vm216 = vcmp.lt.s32.totalorder %v214, 60
        %vm217 = vcmp.lt.s32.totalorder %v215, 60
        %v218 = vsel %vm216, %v207, 0.0
        %v219 = vsel %vm217, %v208, 0.0
        %v220 = vld [vmem:[#allocation2] sm:$0xff]
        %v221 = vld [vmem:[#allocation2 + $0x8] sm:$0xff]
        %v222 = vadd.f32 %v220, %v218
        %v223 = vadd.f32 %v221, %v219
        %vm224 = vcmask 7168
        %225 = vst.msk [vmem:[#allocation2] sm:$0xff] %vm224, %v222
        %226 = vst.msk [vmem:[#allocation2 + $0x8] sm:$0xff] %vm224, %v223
        %p227 = scmp.eq.s32.totalorder %s14, 3
        // Predicated region
        $region33: #{tpu_custom_call.1} parent=27 // pred_check
          %p228 = pneg %p227
        $region34: #{tpu_custom_call.1} parent=27 // pred_check_branch
          %230 = sbr.rel (%p228) target = $region36
        $region35: #{tpu_custom_call.1} parent=27 // pred_region
          %v231 = vld [vmem:[#allocation2] sm:$0xff]
          %v232 = vld [vmem:[#allocation2 + $0x8] sm:$0xff]
          %v233 = vsel %vm224, %v231, 0.0
          %v234 = vsel %vm224, %v232, 0.0
          %v235 = vadd.f32 %v233, %v234
          %v236 = vrot.slane %v235, 4
          %v237 = vadd.f32 %v235, %v236
          %v238 = vrot.slane %v237, 2
          %v239 = vadd.f32 %v237, %v238
          %v240 = vrot.slane %v239, 1
          %v241 = vadd.f32 %v239, %v240
          %vm242 = vcmask 0
          %243 = vst.msk [vmem:[#allocation3] sm:$0x1] %vm242, %v241
        $region36: #{tpu_custom_call.1} parent=27 // pred_fallthru
          _
        // Predicated region
        $region37: #{tpu_custom_call.1} parent=27 // pred_check
          %p244 = pneg %p79
        $region38: #{tpu_custom_call.1} parent=27 // pred_check_branch
          %246 = sbr.rel (%p244) target = $region40
        $region39: #{tpu_custom_call.1} parent=27 // pred_region
          %s248 = ssub.s32 16, 16
          %249 = vsyncadd [#allocation4], %s248
          %s251 = sshll.u32 [#allocation3], 4
          %s252 = int_to_ptr.vmem [resolvable:$true] %s251
          %254 = dma.vmem_to_hbm [thread:$0]  %s252, 16, %s2, [#allocation4]
        $region40: #{tpu_custom_call.1} parent=27 // pred_fallthru
          _
        // Predicated region
        $region41: #{tpu_custom_call.1} parent=27 // pred_check
          %p255 = pneg %p79
        $region42: #{tpu_custom_call.1} parent=27 // pred_check_branch
          %257 = sbr.rel (%p255) target = $region44
        $region43: #{tpu_custom_call.1} parent=27 // pred_region
          %258 = dma.done [#allocation4], 16
        $region44: #{tpu_custom_call.1} parent=27 // pred_fallthru
          _
      $region28: #{tpu_custom_call.1} parent=5 // pred_fallthru
        _
      %p259 = scmp.le.s32.totalorder 2, %s9
      // Predicated region
      $region45: #{tpu_custom_call.1} parent=5 // pred_check
        %p260 = pneg %p259
      $region46: #{tpu_custom_call.1} parent=5 // pred_check_branch
        %262 = sbr.rel (%p260) target = $region48
      $region47: #{tpu_custom_call.1} parent=5 // pred_region
        %s263 = ssub.s32 %s9, 2
      $region48: #{tpu_custom_call.1} parent=5 // pred_fallthru
        _
    $region6: #{tpu_custom_call.1} parent=1 // loop_footer
      %s13 = sadd.s32 1, %s9
    $region7: #{tpu_custom_call.1} parent=1 // loop_footer_branch
      %8 = sbr.rel target = $region3
    $region8: #{tpu_custom_call.1} parent=1 // loop_exit
      _
    %264 = vsyncpa [#allocation4], 1
    %s265 = scalar_lea.sflag [#allocation4], 1
    %266 = vsyncpa %s265, 1

</llo_original>
